<compile_context>
chip_gen: v6e
topology: v6e:2x2x1
jax: 0.10.0
libtpu: 0.0.40
codegen_flags: <defaults>
</compile_context>

<pallas_src>
import functools

import jax
import jax.numpy as jnp
from jax.experimental import pallas as pl
from jax.experimental.pallas import tpu as pltpu


def _gru_cell_kernel(x_ref, h_ref, w_ih_ref, w_hh_ref, b_ref, o_ref,
                     *, compute_dtype):
    """Fused GRU cell on one [block_b, :] batch tile."""
    H = h_ref.shape[-1]

    h_f32 = h_ref[...].astype(jnp.float32)

    x_c = x_ref[...].astype(compute_dtype)
    h_c = h_f32.astype(compute_dtype)
    w_ih = w_ih_ref[...].astype(compute_dtype)
    w_hh = w_hh_ref[...].astype(compute_dtype)

    # MXU matmuls with f32 accumulation; bias add stays in f32.
    b_ih = b_ref[0:1, :]                     # (1, 3H) -> broadcast over sublanes
    b_hh = b_ref[1:2, :]
    gi = jnp.dot(x_c, w_ih, preferred_element_type=jnp.float32) + b_ih
    gh = jnp.dot(h_c, w_hh, preferred_element_type=jnp.float32) + b_hh

    # Static gate slices (lane-tile aligned when H % 128 == 0).
    i_r, i_z, i_n = gi[:, :H], gi[:, H:2 * H], gi[:, 2 * H:]
    h_r, h_z, h_n = gh[:, :H], gh[:, H:2 * H], gh[:, 2 * H:]

    r = jax.nn.sigmoid(i_r + h_r)            # EUP transcendentals
    z = jax.nn.sigmoid(i_z + h_z)
    n = jnp.tanh(i_n + r * h_n)

    h_new = (1.0 - z) * n + z * h_f32
    o_ref[...] = h_new.astype(o_ref.dtype)


def _pick_block_b(B):
    """Prefer large (256-1024) batch tiles (multiple of 8) that divide B."""
    for cand in (1024, 512, 256, 128, 64, 32, 16, 8):
        if cand <= B and B % cand == 0:
            return cand
    return B


def gru_cell_forward(x, h, params, *, block_b=None,
                     compute_dtype=jnp.float32):
    """x: [B, input_size], h: [B, hidden_size] (f32). Returns the new hidden state."""
    B, In = x.shape
    Bh, H = h.shape
    assert B == Bh

    w_ih = params["w_ih"]          # [In, 3H]
    w_hh = params["w_hh"]          # [H,  3H]
    b = params["b"]                # [2,  3H]  (row 0 = b_ih, row 1 = b_hh)
    assert w_ih.shape == (In, 3 * H)
    assert w_hh.shape == (H, 3 * H)
    assert b.shape == (2, 3 * H)

    if block_b is None:
        block_b = _pick_block_b(B)
    assert B % block_b == 0
    assert block_b == B or block_b % 8 == 0, "batch tile must be a multiple of 8"

    grid = (B // block_b,)

    def full_spec(arr):
        # Whole-array block; same (resident) tile for every grid step.
        return pl.BlockSpec(arr.shape, lambda i: (0,) * arr.ndim)

    # Advisory cost hint for XLA scheduling around this small kernel.
    flops = 2 * B * (In * 3 * H + H * 3 * H)
    transcendentals = 3 * B * H                      # 2 sigmoids + 1 tanh per hidden unit
    bytes_accessed = 4 * (B * In + 2 * B * H + In * 3 * H + H * 3 * H + 2 * 3 * H)

    kernel = functools.partial(_gru_cell_kernel, compute_dtype=compute_dtype)

    return pl.pallas_call(
        kernel,
        out_shape=jax.ShapeDtypeStruct((B, H), jnp.float32),
        grid_spec=pltpu.PrefetchScalarGridSpec(
            num_scalar_prefetch=0,
            grid=grid,
            in_specs=[
                pl.BlockSpec((block_b, In), lambda i: (i, 0)),   # x tile
                pl.BlockSpec((block_b, H), lambda i: (i, 0)),    # prev_state tile
                full_spec(w_ih),
                full_spec(w_hh),
                full_spec(b),
            ],
            out_specs=pl.BlockSpec((block_b, H), lambda i: (i, 0)),
        ),
        compiler_params=pltpu.CompilerParams(
            dimension_semantics=("parallel",)),
        cost_estimate=pl.CostEstimate(
            flops=flops,
            transcendentals=transcendentals,
            bytes_accessed=bytes_accessed),
    )(x, h, w_ih, w_hh, b)


def init_gru_cell_params(key, input_size, hidden_size):
    """Init mirroring nn.GRUCell (uniform(-1/sqrt(H), 1/sqrt(H))).

    Weights are stored transposed vs. PyTorch ([in, 3H] instead of [3H, in]);
    gate order along the 3H axis is (r, z, n), matching torch.
    """
    k_wi, k_wh, k_bi, k_bh = jax.random.split(key, 4)
    bound = 1.0 / jnp.sqrt(jnp.float32(hidden_size))

    w_ih = jax.random.uniform(k_wi, (input_size, 3 * hidden_size),
                              jnp.float32, -bound, bound)
    w_hh = jax.random.uniform(k_wh, (hidden_size, 3 * hidden_size),
                              jnp.float32, -bound, bound)
    b_ih = jax.random.uniform(k_bi, (3 * hidden_size,), jnp.float32, -bound, bound)
    b_hh = jax.random.uniform(k_bh, (3 * hidden_size,), jnp.float32, -bound, bound)
    b = jnp.stack([b_ih, b_hh], axis=0)              # [2, 3H]

    return dict(w_ih=w_ih, w_hh=w_hh, b=b)


def gru_cell_reference(x, h, p):
    """Pure-JAX reference of the PyTorch GRUCell forward (correctness check)."""
    gi = x @ p["w_ih"] + p["b"][0]
    gh = h @ p["w_hh"] + p["b"][1]
    i_r, i_z, i_n = jnp.split(gi, 3, axis=-1)
    h_r, h_z, h_n = jnp.split(gh, 3, axis=-1)
    r = jax.nn.sigmoid(i_r + h_r)
    z = jax.nn.sigmoid(i_z + h_z)
    n = jnp.tanh(i_n + r * h_n)
    return (1.0 - z) * n + z * h


if __name__ == "__main__":
    key = jax.random.PRNGKey(0)
    k_x, k_h, k_p = jax.random.split(key, 3)

    # Small demo shapes (the wrapper scales to larger, lane-dense sizes:
    # batch multiple of 8, hidden multiple of 128 for best perf).
    batch = 8
    input_size = 16
    hidden_size = 32

    x = jax.random.normal(k_x, (batch, input_size), jnp.float32)
    h0 = jax.random.normal(k_h, (batch, hidden_size), jnp.float32)
    params = init_gru_cell_params(k_p, input_size, hidden_size)

    # compute_dtype=jnp.bfloat16 is available for v6e/v7x MXU speedups
    # (keep f32 here for a tight numerical check).
    h1 = gru_cell_forward(x, h0, params, compute_dtype=jnp.float32)
    h1 = jax.block_until_ready(h1)

    ref = gru_cell_reference(x, h0, params)
    assert h1.shape == (batch, hidden_size)
    assert jnp.allclose(h1, ref, atol=1e-4, rtol=1e-4), "mismatch vs reference"

    print("KERNEL_OK")
</pallas_src>

<mosaic_0001>
module attributes {stable_mosaic.version = 11 : i64} {
  func.func @_gru_cell_kernel(%arg0: i32, %arg1: memref<8x16xf32, #tpu.memory_space<vmem>>, %arg2: memref<8x32xf32, #tpu.memory_space<vmem>>, %arg3: memref<16x96xf32, #tpu.memory_space<vmem>>, %arg4: memref<32x96xf32, #tpu.memory_space<vmem>>, %arg5: memref<2x96xf32, #tpu.memory_space<vmem>>, %arg6: memref<8x32xf32, #tpu.memory_space<vmem>>) attributes {dimension_semantics = [#tpu.dimension_semantics<parallel>], iteration_bounds = array<i64: 1>, scalar_prefetch = 0 : i64, scratch_operands = 0 : i64, tpu.core_type = #tpu.core_type<tc>, window_params = [{transform_indices = @transform_0, window_bounds = array<i64: 8, 16>}, {transform_indices = @transform_1, window_bounds = array<i64: 8, 32>}, {pipeline_mode = #tpu.pipeline_mode<synchronous>, transform_indices = @transform_2, window_bounds = array<i64: 16, 96>}, {pipeline_mode = #tpu.pipeline_mode<synchronous>, transform_indices = @transform_3, window_bounds = array<i64: 32, 96>}, {pipeline_mode = #tpu.pipeline_mode<synchronous>, transform_indices = @transform_4, window_bounds = array<i64: 2, 96>}, {transform_indices = @transform_5, window_bounds = array<i64: 8, 32>}]} {
    %c0 = arith.constant 0 : index
    %c0_0 = arith.constant 0 : index
    %0 = vector.load %arg2[%c0, %c0_0] : memref<8x32xf32, #tpu.memory_space<vmem>>, vector<8x32xf32>
    %c0_1 = arith.constant 0 : index
    %c0_2 = arith.constant 0 : index
    %1 = vector.load %arg1[%c0_1, %c0_2] : memref<8x16xf32, #tpu.memory_space<vmem>>, vector<8x16xf32>
    %c0_3 = arith.constant 0 : index
    %c0_4 = arith.constant 0 : index
    %2 = vector.load %arg3[%c0_3, %c0_4] : memref<16x96xf32, #tpu.memory_space<vmem>>, vector<16x96xf32>
    %c0_5 = arith.constant 0 : index
    %c0_6 = arith.constant 0 : index
    %3 = vector.load %arg4[%c0_5, %c0_6] : memref<32x96xf32, #tpu.memory_space<vmem>>, vector<32x96xf32>
    %c0_7 = arith.constant 0 : index
    %c0_8 = arith.constant 0 : index
    %4 = vector.load %arg5[%c0_7, %c0_8] : memref<2x96xf32, #tpu.memory_space<vmem>>, vector<1x96xf32>
    %c1 = arith.constant 1 : index
    %c0_9 = arith.constant 0 : index
    %5 = vector.load %arg5[%c1, %c0_9] : memref<2x96xf32, #tpu.memory_space<vmem>>, vector<1x96xf32>
    %cst = arith.constant dense<0.000000e+00> : vector<8x96xf32>
    %6 = tpu.matmul %1, %2, %cst {dimension_numbers = #tpu.dot_dimension_numbers<[1], [0], [0], [1], [0, 0, 1, 1], [], []>} : vector<8x16xf32>, vector<16x96xf32>, vector<8x96xf32> -> vector<8x96xf32>
    %7 = vector.broadcast %4 : vector<1x96xf32> to vector<8x96xf32>
    %8 = arith.addf %6, %7 : vector<8x96xf32>
    %cst_10 = arith.constant dense<0.000000e+00> : vector<8x96xf32>
    %9 = tpu.matmul %0, %3, %cst_10 {dimension_numbers = #tpu.dot_dimension_numbers<[1], [0], [0], [1], [0, 0, 1, 1], [], []>} : vector<8x32xf32>, vector<32x96xf32>, vector<8x96xf32> -> vector<8x96xf32>
    %10 = vector.broadcast %5 : vector<1x96xf32> to vector<8x96xf32>
    %11 = arith.addf %9, %10 : vector<8x96xf32>
    %12 = vector.extract_strided_slice %8 {offsets = [0, 0], sizes = [8, 32], strides = [1, 1]} : vector<8x96xf32> to vector<8x32xf32>
    %13 = vector.extract_strided_slice %8 {offsets = [0, 32], sizes = [8, 32], strides = [1, 1]} : vector<8x96xf32> to vector<8x32xf32>
    %14 = vector.extract_strided_slice %8 {offsets = [0, 64], sizes = [8, 32], strides = [1, 1]} : vector<8x96xf32> to vector<8x32xf32>
    %15 = vector.extract_strided_slice %11 {offsets = [0, 0], sizes = [8, 32], strides = [1, 1]} : vector<8x96xf32> to vector<8x32xf32>
    %16 = vector.extract_strided_slice %11 {offsets = [0, 32], sizes = [8, 32], strides = [1, 1]} : vector<8x96xf32> to vector<8x32xf32>
    %17 = vector.extract_strided_slice %11 {offsets = [0, 64], sizes = [8, 32], strides = [1, 1]} : vector<8x96xf32> to vector<8x32xf32>
    %18 = arith.addf %12, %15 : vector<8x32xf32>
    %19 = arith.negf %18 : vector<8x32xf32>
    %20 = math.exp %19 : vector<8x32xf32>
    %cst_11 = arith.constant 1.000000e+00 : f32
    %21 = vector.broadcast %cst_11 : f32 to vector<8x32xf32>
    %22 = arith.addf %21, %20 : vector<8x32xf32>
    %23 = arith.divf %21, %22 : vector<8x32xf32>
    %24 = arith.addf %13, %16 : vector<8x32xf32>
    %25 = arith.negf %24 : vector<8x32xf32>
    %26 = math.exp %25 : vector<8x32xf32>
    %cst_12 = arith.constant 1.000000e+00 : f32
    %27 = vector.broadcast %cst_12 : f32 to vector<8x32xf32>
    %28 = arith.addf %27, %26 : vector<8x32xf32>
    %29 = arith.divf %27, %28 : vector<8x32xf32>
    %30 = arith.mulf %23, %17 : vector<8x32xf32>
    %31 = arith.addf %14, %30 : vector<8x32xf32>
    %32 = math.tanh %31 : vector<8x32xf32>
    %cst_13 = arith.constant 1.000000e+00 : f32
    %33 = vector.broadcast %cst_13 : f32 to vector<8x32xf32>
    %34 = arith.subf %33, %29 : vector<8x32xf32>
    %35 = arith.mulf %34, %32 : vector<8x32xf32>
    %36 = arith.mulf %29, %0 : vector<8x32xf32>
    %37 = arith.addf %35, %36 : vector<8x32xf32>
    %c0_14 = arith.constant 0 : index
    %c0_15 = arith.constant 0 : index
    %38 = vector.load %arg6[%c0_14, %c0_15] : memref<8x32xf32, #tpu.memory_space<vmem>>, vector<8x32xf32>
    tpu.vector_store %arg6[%c0_14, %c0_15], %37 {strides = array<i32>} : memref<8x32xf32, #tpu.memory_space<vmem>>, vector<8x32xf32>,
    return
  }
  func.func @transform_0(%arg0: i32) -> (i32, i32) {
    %c0_i32 = arith.constant 0 : i32
    %c0_i32_0 = arith.constant 0 : i32
    return %arg0, %c0_i32 : i32, i32
  }
  func.func @transform_1(%arg0: i32) -> (i32, i32) {
    %c0_i32 = arith.constant 0 : i32
    %c0_i32_0 = arith.constant 0 : i32
    return %arg0, %c0_i32 : i32, i32
  }
  func.func @transform_2(%arg0: i32) -> (i32, i32) {
    %c0_i32 = arith.constant 0 : i32
    %c0_i32_0 = arith.constant 0 : i32
    %c0_i32_1 = arith.constant 0 : i32
    return %c0_i32, %c0_i32_0 : i32, i32
  }
  func.func @transform_3(%arg0: i32) -> (i32, i32) {
    %c0_i32 = arith.constant 0 : i32
    %c0_i32_0 = arith.constant 0 : i32
    %c0_i32_1 = arith.constant 0 : i32
    return %c0_i32, %c0_i32_0 : i32, i32
  }
  func.func @transform_4(%arg0: i32) -> (i32, i32) {
    %c0_i32 = arith.constant 0 : i32
    %c0_i32_0 = arith.constant 0 : i32
    %c0_i32_1 = arith.constant 0 : i32
    return %c0_i32, %c0_i32_0 : i32, i32
  }
  func.func @transform_5(%arg0: i32) -> (i32, i32) {
    %c0_i32 = arith.constant 0 : i32
    %c0_i32_0 = arith.constant 0 : i32
    return %arg0, %c0_i32 : i32, i32
  }
}

</mosaic_0001>

<llo_original>
// kernel: tpu_custom_call.1
$region0: #{tpu_custom_call.1}
  #allocation0 [shape = 'u32[]', space=smem, size = 0x4, offset = 0x4, fixed_abs, tag = 'smem constant byte address 0x4 - core index']
  #allocation1 [shape = 'u32[144,128]{1,0:T(1,128)}', space=vmem, size = 0x12000, scoped, tag = 'internal scratch']
  %s0 = inlined_call_operand.hbm [shape: f32[8,16], index: 0, kind: input, shape index: {}]
  %s1 = inlined_call_operand.hbm [shape: f32[8,32], index: 1, kind: input, shape index: {}]
  %s2 = inlined_call_operand.hbm [shape: f32[16,96], index: 2, kind: input, shape index: {}]
  %s3 = inlined_call_operand.hbm [shape: f32[32,96], index: 3, kind: input, shape index: {}]
  %s4 = inlined_call_operand.vmem [shape: f32[2,96], index: 4, kind: input, shape index: {}]
  %s5 = inlined_call_operand.hbm [shape: f32[8,32], index: 5, kind: output, shape index: {}]
  %s6 = sld [smem:[#allocation0]]
  $region46: #{tpu_custom_call.1} parent=0
    _
  %s8 = ssub.s32 1, %s6
  %s9 = scalar_select 0, %s8, %s6
  $region1: #{tpu_custom_call.1} parent=0
    #allocation2 [shape = 'u8[4096]{0}', space=vmem, size = 0x1000, scoped, tag = 'input window, operand 0, single buffered']
    #allocation3 [shape = 's32[1]{0}', space=sflag, size = 0x4, scoped, tag = 'scoped memory for tpu_custom_call.1']
    #allocation4 [shape = 's32[1]{0}', space=sflag, size = 0x4, scoped, tag = 'scoped memory for tpu_custom_call.1']
    #allocation5 [shape = 'u8[4096]{0}', space=vmem, size = 0x1000, scoped, tag = 'input window, operand 1, single buffered']
    #allocation6 [shape = 's32[1]{0}', space=sflag, size = 0x4, scoped, tag = 'scoped memory for tpu_custom_call.1']
    #allocation7 [shape = 'u8[8192]{0}', space=vmem, size = 0x2000, scoped, tag = 'input window, operand 2, single buffered']
    #allocation8 [shape = 'u8[16384]{0}', space=vmem, size = 0x4000, scoped, tag = 'input window, operand 3, single buffered']
    #allocation9 [shape = 's32[1]{0}', space=sflag, size = 0x4, scoped, tag = 'scoped memory for tpu_custom_call.1']
    #allocation10 [shape = 'u8[4096]{0}', space=vmem, size = 0x1000, scoped, tag = 'output window, operand 0, single buffered']
    %10 = vsyncpa [#allocation3], 0
    %11 = vsyncpa [#allocation6], 0
    %12 = vsyncpa [#allocation9], 0
    %13 = vsyncpa [#allocation4], 0
    // Predicated region
    $region2: #{tpu_custom_call.1} parent=1 // pred_check
      _
    $region3: #{tpu_custom_call.1} parent=1 // pred_check_branch
      %15 = sbr.rel (0) target = $region5
    $region4: #{tpu_custom_call.1} parent=1 // pred_region
      %s17 = ssub.s32 128, 128
      %18 = vsyncadd [#allocation3], %s17
      %s20 = sshll.u32 [#allocation2], 4
      %s21 = int_to_ptr.vmem [resolvable:$true] %s20
      %23 = dma.hbm_to_vmem [thread:$0]  %s0, 128, %s21, [#allocation3]
    $region5: #{tpu_custom_call.1} parent=1 // pred_fallthru
      _
    // Predicated region
    $region6: #{tpu_custom_call.1} parent=1 // pred_check
      _
    $region7: #{tpu_custom_call.1} parent=1 // pred_check_branch
      %25 = sbr.rel (0) target = $region9
    $region8: #{tpu_custom_call.1} parent=1 // pred_region
      %s27 = ssub.s32 128, 128
      %28 = vsyncadd [#allocation6], %s27
      %s30 = sshll.u32 [#allocation5], 4
      %s31 = int_to_ptr.vmem [resolvable:$true] %s30
      %33 = dma.hbm_to_vmem [thread:$0]  %s1, 128, %s31, [#allocation6]
    $region9: #{tpu_custom_call.1} parent=1 // pred_fallthru
      _
    // Predicated region
    $region10: #{tpu_custom_call.1} parent=1 // pred_check
      _
    $region11: #{tpu_custom_call.1} parent=1 // pred_check_branch
      %35 = sbr.rel (0) target = $region13
    $region12: #{tpu_custom_call.1} parent=1 // pred_region
      %s37 = ssub.s32 256, 256
      %38 = vsyncadd [#allocation6], %s37
      %s39 = sshll.u32 [#allocation7], 4
      %s40 = int_to_ptr.vmem [resolvable:$true] %s39
      %45 = dma.hbm_to_vmem [thread:$0]  %s2, 256, %s40, [#allocation6], 128, 128, 8
    $region13: #{tpu_custom_call.1} parent=1 // pred_fallthru
      _
    // Predicated region
    $region14: #{tpu_custom_call.1} parent=1 // pred_check
      _
    $region15: #{tpu_custom_call.1} parent=1 // pred_check_branch
      %47 = sbr.rel (0) target = $region17
    $region16: #{tpu_custom_call.1} parent=1 // pred_region
      %s49 = ssub.s32 512, 512
      %50 = vsyncadd [#allocation9], %s49
      %s51 = sshll.u32 [#allocation8], 4
      %s52 = int_to_ptr.vmem [resolvable:$true] %s51
      %57 = dma.hbm_to_vmem [thread:$0]  %s3, 512, %s52, [#allocation9], 128, 128, 8
    $region17: #{tpu_custom_call.1} parent=1 // pred_fallthru
      _
    // Predicated region
    $region18: #{tpu_custom_call.1} parent=1 // pred_check
      _
    $region19: #{tpu_custom_call.1} parent=1 // pred_check_branch
      %59 = sbr.rel (0) target = $region21
    $region20: #{tpu_custom_call.1} parent=1 // pred_region
      _
    $region21: #{tpu_custom_call.1} parent=1 // pred_fallthru
      _
    // Predicated region
    $region22: #{tpu_custom_call.1} parent=1 // pred_check
      _
    $region23: #{tpu_custom_call.1} parent=1 // pred_check_branch
      %61 = sbr.rel (0) target = $region25
    $region24: #{tpu_custom_call.1} parent=1 // pred_region
      %62 = dma.done [#allocation3], 128
    $region25: #{tpu_custom_call.1} parent=1 // pred_fallthru
      _
    // Predicated region
    $region26: #{tpu_custom_call.1} parent=1 // pred_check
      _
    $region27: #{tpu_custom_call.1} parent=1 // pred_check_branch
      %64 = sbr.rel (0) target = $region29
    $region28: #{tpu_custom_call.1} parent=1 // pred_region
      %65 = dma.done [#allocation6], 128
    $region29: #{tpu_custom_call.1} parent=1 // pred_fallthru
      _
    // Predicated region
    $region30: #{tpu_custom_call.1} parent=1 // pred_check
      _
    $region31: #{tpu_custom_call.1} parent=1 // pred_check_branch
      %67 = sbr.rel (0) target = $region33
    $region32: #{tpu_custom_call.1} parent=1 // pred_region
      %68 = dma.done [#allocation6], 256
    $region33: #{tpu_custom_call.1} parent=1 // pred_fallthru
      _
    // Predicated region
    $region34: #{tpu_custom_call.1} parent=1 // pred_check
      _
    $region35: #{tpu_custom_call.1} parent=1 // pred_check_branch
      %70 = sbr.rel (0) target = $region37
    $region36: #{tpu_custom_call.1} parent=1 // pred_region
      %71 = dma.done [#allocation9], 512
    $region37: #{tpu_custom_call.1} parent=1 // pred_fallthru
      _
    %v72 = vld [vmem:[#allocation5] sm:$0xff]
    %v73 = vld [vmem:[#allocation2] sm:$0xff]
    %v74 = vld [vmem:[#allocation7] sm:$0xff]
    %v75 = vld [vmem:[#allocation7 + $0x8] sm:$0xff]
    %v76 = vld [vmem:[#allocation8] sm:$0xff]
    %v77 = vld [vmem:[#allocation8 + $0x8] sm:$0xff]
    %v78 = vld [vmem:[#allocation8 + $0x10] sm:$0xff]
    %v79 = vld [vmem:[#allocation8 + $0x18] sm:$0xff]
    %v80 = vld [vmem:[%s4] sm:$0x1]
    %v81 = vld [vmem:[%s4 + $0x1] sm:$0x1]
    %v82 = vlaneseq
    %v83 = vshrl.u32 %v82, 7
    %v84 = vsub.s32 0, %v83
    %v85 = vrot.slane %v80, %v84
    %vm86 = vcmask 130048
    %v88 = vsel %vm86, %v73, 0
    %90 = vmatprep.subr.mxu0 0.0
    %91 = vmatpush1.msra.mxu0 0.0
    %92 = vmatprep.subr.mxu0 0.0
    %93 = vmatpush1.msra.mxu0 0.0
    %94 = vmatprep.subr.mxu0 0.0
    %95 = vmatpush1.msra.mxu0 0.0
    %96 = vmatprep.subr.mxu0 0.0
    %97 = vmatpush1.msra.mxu0 0.0
    %98 = vmatprep.subr.mxu0 0.0
    %99 = vmatpush1.msra.mxu0 0.0
    %100 = vmatprep.subr.mxu0 0.0
    %101 = vmatpush1.msra.mxu0 0.0
    %102 = vmatprep.subr.mxu0 0.0
    %103 = vmatpush1.msra.mxu0 0.0
    %104 = vmatprep.subr.mxu0 0.0
    %105 = vmatpush1.msra.mxu0 0.0
    %106 = vmatprep.subr.mxu0 0.0
    %107 = vmatpush1.msra.mxu0 0.0
    %108 = vmatprep.subr.mxu0 0.0
    %109 = vmatpush1.msra.mxu0 0.0
    %110 = vmatprep.subr.mxu0 0.0
    %111 = vmatpush1.msra.mxu0 0.0
    %112 = vmatprep.subr.mxu0 0.0
    %113 = vmatpush1.msra.mxu0 0.0
    %114 = vmatprep.subr.mxu0 0.0
    %115 = vmatpush1.msra.mxu0 0.0
    %116 = vmatprep.subr.mxu0 0.0
    %117 = vmatpush1.msra.mxu0 0.0
    %118 = vmatprep.subr.mxu0 0.0
    %119 = vmatpush1.msra.mxu0 %v75
    %120 = vmatprep.subr.mxu0 0.0
    %121 = vmatpush1.msra.mxu0 %v74
    %122 = vmatprep.subr.mxu0 0.0
    %123 = vmatpush2.msra.mxu0 0.0
    %124 = vmatprep.subr.mxu0 0.0
    %125 = vmatpush2.msra.mxu0 0.0
    %126 = vmatprep.subr.mxu0 0.0
    %127 = vmatpush2.msra.mxu0 0.0
    %128 = vmatprep.subr.mxu0 0.0
    %129 = vmatpush2.msra.mxu0 0.0
    %130 = vmatprep.subr.mxu0 0.0
    %131 = vmatpush2.msra.mxu0 0.0
    %132 = vmatprep.subr.mxu0 0.0
    %133 = vmatpush2.msra.mxu0 0.0
    %134 = vmatprep.subr.mxu0 0.0
    %135 = vmatpush2.msra.mxu0 0.0
    %136 = vmatprep.subr.mxu0 0.0
    %137 = vmatpush2.msra.mxu0 0.0
    %138 = vmatprep.subr.mxu0 0.0
    %139 = vmatpush2.msra.mxu0 0.0
    %140 = vmatprep.subr.mxu0 0.0
    %141 = vmatpush2.msra.mxu0 0.0
    %142 = vmatprep.subr.mxu0 0.0
    %143 = vmatpush2.msra.mxu0 0.0
    %144 = vmatprep.subr.mxu0 0.0
    %145 = vmatpush2.msra.mxu0 0.0
    %146 = vmatprep.subr.mxu0 0.0
    %147 = vmatpush2.msra.mxu0 0.0
    %148 = vmatprep.subr.mxu0 0.0
    %149 = vmatpush2.msra.mxu0 0.0
    %150 = vmatprep.subr.mxu0 0.0
    %151 = vmatpush2.msra.mxu0 0.0
    %152 = vmatprep.subr.mxu0 0.0
    %153 = vmatpush2.msra.mxu0 0.0
    %154 = vmatprep.mubr.f32.mxu0 0.0
    %155 = vmatmul.mubr.f32.gmra.mxu0 %v88
    %v156 = vpop.f32.mrf.mxu0
    %v157 = vadd.f32 %v85, %v156
    %v158 = vpop.f32.mrf.mxu0
    %159 = vdwg.mxu0
    %v160 = vlaneseq
    %v161 = vshrl.u32 %v160, 7
    %v162 = vsub.s32 0, %v161
    %v163 = vrot.slane %v81, %v162
    %vm164 = vcmask 261120
    %v166 = vsel %vm164, %v72, 0
    %168 = vmatprep.subr.mxu0 0.0
    %169 = vmatpush1.msra.mxu0 0.0
    %170 = vmatprep.subr.mxu0 0.0
    %171 = vmatpush1.msra.mxu0 0.0
    %172 = vmatprep.subr.mxu0 0.0
    %173 = vmatpush1.msra.mxu0 0.0
    %174 = vmatprep.subr.mxu0 0.0
    %175 = vmatpush1.msra.mxu0 0.0
    %176 = vmatprep.subr.mxu0 0.0
    %177 = vmatpush1.msra.mxu0 0.0
    %178 = vmatprep.subr.mxu0 0.0
    %179 = vmatpush1.msra.mxu0 0.0
    %180 = vmatprep.subr.mxu0 0.0
    %181 = vmatpush1.msra.mxu0 0.0
    %182 = vmatprep.subr.mxu0 0.0
    %183 = vmatpush1.msra.mxu0 0.0
    %184 = vmatprep.subr.mxu0 0.0
    %185 = vmatpush1.msra.mxu0 0.0
    %186 = vmatprep.subr.mxu0 0.0
    %187 = vmatpush1.msra.mxu0 0.0
    %188 = vmatprep.subr.mxu0 0.0
    %189 = vmatpush1.msra.mxu0 0.0
    %190 = vmatprep.subr.mxu0 0.0
    %191 = vmatpush1.msra.mxu0 0.0
    %192 = vmatprep.subr.mxu0 0.0
    %193 = vmatpush1.msra.mxu0 %v79
    %194 = vmatprep.subr.mxu0 0.0
    %195 = vmatpush1.msra.mxu0 %v78
    %196 = vmatprep.subr.mxu0 0.0
    %197 = vmatpush1.msra.mxu0 %v77
    %198 = vmatprep.subr.mxu0 0.0
    %199 = vmatpush1.msra.mxu0 %v76
    %200 = vmatprep.subr.mxu0 0.0
    %201 = vmatpush2.msra.mxu0 0.0
    %202 = vmatprep.subr.mxu0 0.0
    %203 = vmatpush2.msra.mxu0 0.0
    %204 = vmatprep.subr.mxu0 0.0
    %205 = vmatpush2.msra.mxu0 0.0
    %206 = vmatprep.subr.mxu0 0.0
    %207 = vmatpush2.msra.mxu0 0.0
    %208 = vmatprep.subr.mxu0 0.0
    %209 = vmatpush2.msra.mxu0 0.0
    %210 = vmatprep.subr.mxu0 0.0
    %211 = vmatpush2.msra.mxu0 0.0
    %212 = vmatprep.subr.mxu0 0.0
    %213 = vmatpush2.msra.mxu0 0.0
    %214 = vmatprep.subr.mxu0 0.0
    %215 = vmatpush2.msra.mxu0 0.0
    %216 = vmatprep.subr.mxu0 0.0
    %217 = vmatpush2.msra.mxu0 0.0
    %218 = vmatprep.subr.mxu0 0.0
    %219 = vmatpush2.msra.mxu0 0.0
    %220 = vmatprep.subr.mxu0 0.0
    %221 = vmatpush2.msra.mxu0 0.0
    %222 = vmatprep.subr.mxu0 0.0
    %223 = vmatpush2.msra.mxu0 0.0
    %224 = vmatprep.subr.mxu0 0.0
    %225 = vmatpush2.msra.mxu0 0.0
    %226 = vmatprep.subr.mxu0 0.0
    %227 = vmatpush2.msra.mxu0 0.0
    %228 = vmatprep.subr.mxu0 0.0
    %229 = vmatpush2.msra.mxu0 0.0
    %230 = vmatprep.subr.mxu0 0.0
    %231 = vmatpush2.msra.mxu0 0.0
    %232 = vmatprep.mubr.f32.mxu0 0.0
    %233 = vmatmul.mubr.f32.gmra.mxu0 %v166
    %v234 = vpop.f32.mrf.mxu0
    %v235 = vadd.f32 %v163, %v234
    %v236 = vpop.f32.mrf.mxu0
    %237 = vdwg.mxu0
    %v238 = vadd.f32 %v157, %v235
    %v239 = vxor.u32 %v238, 2147483648
    %v240 = vmul.f32 %v239, 1.442695
    %v241 = vpow.pop %v240
    %v242 = vadd.f32 %v241, 1.0
    %v243 = vrcp.pop %v242
    %v244 = vmul.f32 1.0, %v243
    %246 = vrot.lane.b32.xlu0 %v235, 64
    %v247 = vpop.permute.xlu0 %246
    %v249 = vmul.f32 %v244, %v247
    %251 = vrot.lane.b32.xlu0 %v249, 64
    %v252 = vpop.permute.xlu0 %251
    %v254 = vadd.f32 %v157, %v252
    %v255 = vtanh.pop %v254
    %v256 = vsub.f32 1.0, %v244
    %258 = vrot.lane.b32.xlu0 %v255, 96
    %v259 = vpop.permute.xlu0 %258
    %v261 = vmul.f32 %v256, %v259
    %262 = vrot.lane.b32.xlu0 %v72, 32
    %v263 = vpop.permute.xlu0 %262
    %v265 = vmul.f32 %v244, %v263
    %v266 = vadd.f32 %v261, %v265
    %268 = vrot.lane.b32.xlu0 %v266, 96
    %v269 = vpop.permute.xlu0 %268
    %271 = vst.msk [vmem:[#allocation10] sm:$0xff] %vm164, %v269
    // Predicated region
    $region38: #{tpu_custom_call.1} parent=1 // pred_check
      _
    $region39: #{tpu_custom_call.1} parent=1 // pred_check_branch
      %273 = sbr.rel (0) target = $region41
    $region40: #{tpu_custom_call.1} parent=1 // pred_region
      %s275 = ssub.s32 128, 128
      %276 = vsyncadd [#allocation4], %s275
      %s278 = sshll.u32 [#allocation10], 4
      %s279 = int_to_ptr.vmem [resolvable:$true] %s278
      %281 = dma.vmem_to_hbm [thread:$0]  %s279, 128, %s5, [#allocation4]
    $region41: #{tpu_custom_call.1} parent=1 // pred_fallthru
      _
    // Predicated region
    $region42: #{tpu_custom_call.1} parent=1 // pred_check
      _
    $region43: #{tpu_custom_call.1} parent=1 // pred_check_branch
      %283 = sbr.rel (0) target = $region45
    $region44: #{tpu_custom_call.1} parent=1 // pred_region
      %284 = dma.done [#allocation4], 128
    $region45: #{tpu_custom_call.1} parent=1 // pred_fallthru
      _
    %285 = vsyncpa [#allocation3], 1
    %286 = vsyncpa [#allocation6], 1
    %287 = vsyncpa [#allocation9], 1
    %288 = vsyncpa [#allocation4], 1

</llo_original>
